<compile_context>
chip_gen: v5e
topology: v5e:2x2
jax: 0.10.0
libtpu: 0.0.40
codegen_flags: <defaults>
</compile_context>

<pallas_src>
import numpy as np
import jax
import jax.numpy as jnp
from jax.experimental import pallas as pl
from jax.experimental.pallas import tpu as pltpu

N_HIDDEN = 32
N_INPUT = 2     # effective input width after the K-addition trick
N_OUTPUT = 1


def fcnn_fourier_kernel(t_ref, wr_ref, wt_ref, phase_ref, wo_ref, b_ref, o_ref):
    """One batch tile, batch on lanes.

    t_ref:     (2, T)    row 0 = r, row 1 = theta
    wr_ref:    (2H, 1)   combined [w_sin; w_cos] column for r
    wt_ref:    (2H, 1)   combined [w_sin; w_cos] column for theta
    phase_ref: (2H, 1)   0 for the sin half, pi/2 for the cos half
    wo_ref:    (2H, 1)   output Linear weights (sin part then cos part)
    b_ref:     (1,)      output bias (SMEM scalar)
    o_ref:     (1, T)    lane-dense output tile
    """
    r_row = t_ref[0:1, :]                                     # (1, T)
    th_row = t_ref[1:2, :]                                    # (1, T)

    # First layer: K=2 contraction as VPU broadcast FMAs (no MXU).
    pre = wr_ref[...] * r_row + wt_ref[...] * th_row + phase_ref[...]   # (2H, T)

    # Single fused transcendental pass (cos(x) == sin(x + pi/2)).
    act = jnp.sin(pre)                                        # (2H, T)

    # Output layer: elementwise scale + sublane (XLU) reduction, bias from SMEM.
    out = jnp.sum(act * wo_ref[...], axis=0, keepdims=True) + b_ref[0]  # (1, T)
    o_ref[...] = out.astype(o_ref.dtype)


def fcnn_fourier_forward(t, w_sin, w_cos, w_out, b_out, *,
                         tile_n=4096, xla_fallback_rows=1024):
    """t: (N, 2); w_sin/w_cos: (H, 2) PyTorch layout; w_out: (1, 2H); b_out: (1,)."""
    t = jnp.asarray(t, jnp.float32)
    w_sin = jnp.asarray(w_sin, jnp.float32)
    w_cos = jnp.asarray(w_cos, jnp.float32)
    w_out = jnp.asarray(w_out, jnp.float32)
    b_out = jnp.asarray(b_out, jnp.float32)

    n = t.shape[0]
    h = w_sin.shape[0]
    assert w_out.shape == (N_OUTPUT, 2 * h) and b_out.shape == (N_OUTPUT,)
    assert tile_n % 128 == 0

    # Tiny batches: pallas_call launch + per-step pipeline cost dominates;
    # let XLA fuse the handful of VPU/EUP ops instead.
    if n < xla_fallback_rows:
        sin = jnp.sin(t @ w_sin.T)
        cos = jnp.cos(t @ w_cos.T)
        return jnp.concatenate([sin, cos], axis=1) @ w_out.T + b_out[None, :]

    # --- parameter prep (sin/cos fusion via a pi/2 phase shift) -------------
    w_comb = jnp.concatenate([w_sin, w_cos], axis=0)          # (2H, 2)
    w_r = w_comb[:, 0:1]                                      # (2H, 1)
    w_th = w_comb[:, 1:2]                                     # (2H, 1)
    phase = jnp.concatenate(
        [jnp.zeros((h, 1), jnp.float32),
         jnp.full((h, 1), jnp.pi / 2, jnp.float32)], axis=0)  # (2H, 1)
    wo = w_out.reshape(2 * h, 1)                              # (2H, 1)
    b = b_out.reshape(1)                                      # (1,) -> SMEM

    # --- layout: pad batch to a lane-dense tile and put batch on lanes ------
    tile = min(tile_n, 128 * pl.cdiv(n, 128))                 # multiple of 128
    n_pad = tile * pl.cdiv(n, tile)
    t_pad = jnp.pad(t, ((0, n_pad - n), (0, 0)))              # (N_pad, 2)
    t_t = t_pad.T                                             # (2, N_pad)

    grid = (n_pad // tile,)
    out = pl.pallas_call(
        fcnn_fourier_kernel,
        out_shape=jax.ShapeDtypeStruct((1, n_pad), jnp.float32),
        grid=grid,
        in_specs=[
            pl.BlockSpec((2, tile), lambda i: (0, i)),        # t tile
            pl.BlockSpec((2 * h, 1), lambda i: (0, 0)),       # w_r  (resident)
            pl.BlockSpec((2 * h, 1), lambda i: (0, 0)),       # w_th (resident)
            pl.BlockSpec((2 * h, 1), lambda i: (0, 0)),       # phase
            pl.BlockSpec((2 * h, 1), lambda i: (0, 0)),       # wo
            pl.BlockSpec(memory_space=pltpu.MemorySpace.SMEM),  # bias scalar
        ],
        out_specs=pl.BlockSpec((1, tile), lambda i: (0, i)),  # lane-dense
        compiler_params=pltpu.CompilerParams(
            dimension_semantics=("parallel",)),               # megacore on v7x
    )(t_t, w_r, w_th, phase, wo, b)

    return out[:, :n].T                                       # (N, 1)


def reference_forward(t, w_sin, w_cos, w_out, b_out):
    sin = jnp.sin(t @ w_sin.T)
    cos = jnp.cos(t @ w_cos.T)
    combined = jnp.concatenate([sin, cos], axis=1)
    return combined @ w_out.T + b_out[None, :]


def init_params(key):
    """Deterministic synthetic parameters mirroring the module's __init__."""
    k1, k2, k3, k4 = jax.random.split(key, 4)
    # nn.Linear(1, H, bias=False) default init: U(-1, 1) since fan_in = 1.
    w0_sin = jax.random.uniform(k1, (N_HIDDEN, 1), jnp.float32, -1.0, 1.0)
    w0_cos = jax.random.uniform(k2, (N_HIDDEN, 1), jnp.float32, -1.0, 1.0)
    # K = [[2*pi*k/4, k] for k in range(H)]  -> shape (H, 2)
    k_r = 2.0 * np.pi * np.arange(N_HIDDEN) / 4.0
    k_theta = np.arange(N_HIDDEN, dtype=np.float64)
    K = jnp.asarray(np.stack([k_r, k_theta], axis=1), jnp.float32)  # (H, 2)
    w_sin = w0_sin + K          # broadcast (H,1)+(H,2) -> (H,2), as in PyTorch
    w_cos = w0_cos + K
    # Output Linear(2H, 1): U(-1/sqrt(2H), 1/sqrt(2H)) for weight and bias.
    bound = 1.0 / np.sqrt(2 * N_HIDDEN)
    w_out = jax.random.uniform(k3, (N_OUTPUT, 2 * N_HIDDEN), jnp.float32,
                               -bound, bound)
    b_out = jax.random.uniform(k4, (N_OUTPUT,), jnp.float32, -bound, bound)
    return w_sin, w_cos, w_out, b_out


if __name__ == "__main__":
    key = jax.random.PRNGKey(0)
    k_params, k_t1, k_t2 = jax.random.split(key, 3)
    w_sin, w_cos, w_out, b_out = init_params(k_params)

    # 1) Small demo batch; force the Pallas path (single 128-wide tile).
    batch = 16
    t_small = jax.random.normal(k_t1, (batch, N_INPUT), jnp.float32)
    out_small = fcnn_fourier_forward(t_small, w_sin, w_cos, w_out, b_out,
                                     xla_fallback_rows=0)
    out_small = jax.block_until_ready(out_small)
    ref_small = reference_forward(t_small, w_sin, w_cos, w_out, b_out)
    assert out_small.shape == (batch, N_OUTPUT)
    # atol relaxed slightly: cos(x) == sin(x + pi/2) fusion is exact only up to
    # the f32 rounding of the phase add on large pre-activations.
    assert jnp.allclose(out_small, ref_small, atol=1e-4, rtol=1e-4), \
        "mismatch vs reference (small batch)"

    # 2) Ragged batch exercising the multi-tile grid + padding path.
    batch2 = 300
    t_big = jax.random.normal(k_t2, (batch2, N_INPUT), jnp.float32)
    out_big = fcnn_fourier_forward(t_big, w_sin, w_cos, w_out, b_out,
                                   tile_n=128, xla_fallback_rows=0)
    out_big = jax.block_until_ready(out_big)
    ref_big = reference_forward(t_big, w_sin, w_cos, w_out, b_out)
    assert out_big.shape == (batch2, N_OUTPUT)
    assert jnp.allclose(out_big, ref_big, atol=1e-4, rtol=1e-4), \
        "mismatch vs reference (multi-tile batch)"

    print("KERNEL_OK")
</pallas_src>

<mosaic_0001>
module attributes {stable_mosaic.version = 11 : i64} {
  func.func @fcnn_fourier_kernel(%arg0: i32, %arg1: memref<2x128xf32, #tpu.memory_space<vmem>>, %arg2: memref<64x1xf32, #tpu.memory_space<vmem>>, %arg3: memref<64x1xf32, #tpu.memory_space<vmem>>, %arg4: memref<64x1xf32, #tpu.memory_space<vmem>>, %arg5: memref<64x1xf32, #tpu.memory_space<vmem>>, %arg6: memref<1xf32, #tpu.memory_space<smem>>, %arg7: memref<1x128xf32, #tpu.memory_space<vmem>>) attributes {dimension_semantics = [#tpu.dimension_semantics<parallel>], iteration_bounds = array<i64: 1>, scalar_prefetch = 0 : i64, scratch_operands = 0 : i64, tpu.core_type = #tpu.core_type<tc>, window_params = [{transform_indices = @transform_0, window_bounds = array<i64: 2, 128>}, {pipeline_mode = #tpu.pipeline_mode<synchronous>, transform_indices = @transform_1, window_bounds = array<i64: 64, 1>}, {pipeline_mode = #tpu.pipeline_mode<synchronous>, transform_indices = @transform_2, window_bounds = array<i64: 64, 1>}, {pipeline_mode = #tpu.pipeline_mode<synchronous>, transform_indices = @transform_3, window_bounds = array<i64: 64, 1>}, {pipeline_mode = #tpu.pipeline_mode<synchronous>, transform_indices = @transform_4, window_bounds = array<i64: 64, 1>}, {transform_indices = @transform_5, window_bounds = array<i64: 1>}, {transform_indices = @transform_6, window_bounds = array<i64: 1, 128>}]} {
    %c0 = arith.constant 0 : index
    %c0_0 = arith.constant 0 : index
    %0 = vector.load %arg1[%c0, %c0_0] : memref<2x128xf32, #tpu.memory_space<vmem>>, vector<1x128xf32>
    %c1 = arith.constant 1 : index
    %c0_1 = arith.constant 0 : index
    %1 = vector.load %arg1[%c1, %c0_1] : memref<2x128xf32, #tpu.memory_space<vmem>>, vector<1x128xf32>
    %c0_2 = arith.constant 0 : index
    %c0_3 = arith.constant 0 : index
    %2 = vector.load %arg2[%c0_2, %c0_3] : memref<64x1xf32, #tpu.memory_space<vmem>>, vector<64x1xf32>
    %3 = vector.broadcast %2 : vector<64x1xf32> to vector<64x128xf32>
    %4 = vector.broadcast %0 : vector<1x128xf32> to vector<64x128xf32>
    %5 = arith.mulf %3, %4 : vector<64x128xf32>
    %c0_4 = arith.constant 0 : index
    %c0_5 = arith.constant 0 : index
    %6 = vector.load %arg3[%c0_4, %c0_5] : memref<64x1xf32, #tpu.memory_space<vmem>>, vector<64x1xf32>
    %7 = vector.broadcast %6 : vector<64x1xf32> to vector<64x128xf32>
    %8 = vector.broadcast %1 : vector<1x128xf32> to vector<64x128xf32>
    %9 = arith.mulf %7, %8 : vector<64x128xf32>
    %10 = arith.addf %5, %9 : vector<64x128xf32>
    %c0_6 = arith.constant 0 : index
    %c0_7 = arith.constant 0 : index
    %11 = vector.load %arg4[%c0_6, %c0_7] : memref<64x1xf32, #tpu.memory_space<vmem>>, vector<64x1xf32>
    %12 = vector.broadcast %11 : vector<64x1xf32> to vector<64x128xf32>
    %13 = arith.addf %10, %12 : vector<64x128xf32>
    %14 = math.sin %13 : vector<64x128xf32>
    %c0_8 = arith.constant 0 : index
    %c0_9 = arith.constant 0 : index
    %15 = vector.load %arg5[%c0_8, %c0_9] : memref<64x1xf32, #tpu.memory_space<vmem>>, vector<64x1xf32>
    %16 = vector.broadcast %15 : vector<64x1xf32> to vector<64x128xf32>
    %17 = arith.mulf %14, %16 : vector<64x128xf32>
    %cst = arith.constant dense<0.000000e+00> : vector<128xf32>
    %18 = vector.multi_reduction <add>, %17, %cst [0] : vector<64x128xf32> to vector<128xf32>
    %19 = vector.shape_cast %18 : vector<128xf32> to vector<1x128xf32>
    %c0_10 = arith.constant 0 : index
    %20 = memref.load %arg6[%c0_10] : memref<1xf32, #tpu.memory_space<smem>>
    %21 = vector.broadcast %20 : f32 to vector<1x128xf32>
    %22 = arith.addf %19, %21 : vector<1x128xf32>
    %c0_11 = arith.constant 0 : index
    %c0_12 = arith.constant 0 : index
    %23 = vector.load %arg7[%c0_11, %c0_12] : memref<1x128xf32, #tpu.memory_space<vmem>>, vector<1x128xf32>
    tpu.vector_store %arg7[%c0_11, %c0_12], %22 {strides = array<i32>} : memref<1x128xf32, #tpu.memory_space<vmem>>, vector<1x128xf32>,
    return
  }
  func.func @transform_0(%arg0: i32) -> (i32, i32) {
    %c0_i32 = arith.constant 0 : i32
    %c0_i32_0 = arith.constant 0 : i32
    return %c0_i32, %arg0 : i32, i32
  }
  func.func @transform_1(%arg0: i32) -> (i32, i32) {
    %c0_i32 = arith.constant 0 : i32
    %c0_i32_0 = arith.constant 0 : i32
    %c0_i32_1 = arith.constant 0 : i32
    return %c0_i32, %c0_i32_0 : i32, i32
  }
  func.func @transform_2(%arg0: i32) -> (i32, i32) {
    %c0_i32 = arith.constant 0 : i32
    %c0_i32_0 = arith.constant 0 : i32
    %c0_i32_1 = arith.constant 0 : i32
    return %c0_i32, %c0_i32_0 : i32, i32
  }
  func.func @transform_3(%arg0: i32) -> (i32, i32) {
    %c0_i32 = arith.constant 0 : i32
    %c0_i32_0 = arith.constant 0 : i32
    %c0_i32_1 = arith.constant 0 : i32
    return %c0_i32, %c0_i32_0 : i32, i32
  }
  func.func @transform_4(%arg0: i32) -> (i32, i32) {
    %c0_i32 = arith.constant 0 : i32
    %c0_i32_0 = arith.constant 0 : i32
    %c0_i32_1 = arith.constant 0 : i32
    return %c0_i32, %c0_i32_0 : i32, i32
  }
  func.func @transform_5(%arg0: i32) -> i32 {
    %c0_i32 = arith.constant 0 : i32
    %c0_i32_0 = arith.constant 0 : i32
    return %c0_i32 : i32
  }
  func.func @transform_6(%arg0: i32) -> (i32, i32) {
    %c0_i32 = arith.constant 0 : i32
    %c0_i32_0 = arith.constant 0 : i32
    return %c0_i32, %arg0 : i32, i32
  }
}

</mosaic_0001>

<llo_original>
// kernel: tpu_custom_call.1
$region0: #{tpu_custom_call.1}
  #allocation0 [shape = 'u32[]', space=smem, size = 0x4, offset = 0x4, fixed_abs, tag = 'smem constant byte address 0x4 - core index']
  #allocation1 [shape = 'u32[72,128]{1,0:T(1,128)}', space=vmem, size = 0x9000, scoped, tag = 'internal scratch']
  #allocation2 [shape = 'f32[1]{0:T(128)S(6)}', space=smem, size = 0x200, scoped, tag = 'scoped memory for tpu_custom_call.1']
  %s0 = inlined_call_operand.vmem [shape: f32[2,128], index: 0, kind: input, shape index: {}]
  %s1 = inlined_call_operand.vmem [shape: f32[64,1], index: 1, kind: input, shape index: {}]
  %s2 = inlined_call_operand.vmem [shape: f32[64,1], index: 2, kind: input, shape index: {}]
  %s3 = inlined_call_operand.vmem [shape: f32[64,1], index: 3, kind: input, shape index: {}]
  %s4 = inlined_call_operand.vmem [shape: f32[64,1], index: 4, kind: input, shape index: {}]
  %s5 = inlined_call_operand.<no memory space> [shape: f32[1], index: 5, kind: input, shape index: {}]
  %s6 = inlined_call_operand.hbm [shape: f32[1,128], index: 6, kind: output, shape index: {}]
  %s7 = sld [smem:[#allocation0]]
  $region34: #{tpu_custom_call.1} parent=0
    _
  %s9 = ssub.s32 1, %s7
  %s10 = scalar_select 0, %s9, %s7
  %11 = sst [smem:[#allocation2]] %s5
  $region1: #{tpu_custom_call.1} parent=0
    #allocation3 [shape = 'u8[512]{0}', space=vmem, size = 0x400, scoped, tag = 'output window, operand 0, single buffered']
    #allocation4 [shape = 's32[1]{0}', space=sflag, size = 0x4, scoped, tag = 'scoped memory for tpu_custom_call.1']
    %12 = vsyncpa [#allocation4], 0
    // Predicated region
    $region2: #{tpu_custom_call.1} parent=1 // pred_check
      _
    $region3: #{tpu_custom_call.1} parent=1 // pred_check_branch
      %14 = sbr.rel (0) target = $region5
    $region4: #{tpu_custom_call.1} parent=1 // pred_region
      _
    $region5: #{tpu_custom_call.1} parent=1 // pred_fallthru
      _
    // Predicated region
    $region6: #{tpu_custom_call.1} parent=1 // pred_check
      _
    $region7: #{tpu_custom_call.1} parent=1 // pred_check_branch
      %16 = sbr.rel (0) target = $region9
    $region8: #{tpu_custom_call.1} parent=1 // pred_region
      _
    $region9: #{tpu_custom_call.1} parent=1 // pred_fallthru
      _
    // Predicated region
    $region10: #{tpu_custom_call.1} parent=1 // pred_check
      _
    $region11: #{tpu_custom_call.1} parent=1 // pred_check_branch
      %18 = sbr.rel (0) target = $region13
    $region12: #{tpu_custom_call.1} parent=1 // pred_region
      _
    $region13: #{tpu_custom_call.1} parent=1 // pred_fallthru
      _
    // Predicated region
    $region14: #{tpu_custom_call.1} parent=1 // pred_check
      _
    $region15: #{tpu_custom_call.1} parent=1 // pred_check_branch
      %20 = sbr.rel (0) target = $region17
    $region16: #{tpu_custom_call.1} parent=1 // pred_region
      _
    $region17: #{tpu_custom_call.1} parent=1 // pred_fallthru
      _
    // Predicated region
    $region18: #{tpu_custom_call.1} parent=1 // pred_check
      _
    $region19: #{tpu_custom_call.1} parent=1 // pred_check_branch
      %22 = sbr.rel (0) target = $region21
    $region20: #{tpu_custom_call.1} parent=1 // pred_region
      _
    $region21: #{tpu_custom_call.1} parent=1 // pred_fallthru
      _
    // Predicated region
    $region22: #{tpu_custom_call.1} parent=1 // pred_check
      _
    $region23: #{tpu_custom_call.1} parent=1 // pred_check_branch
      %24 = sbr.rel (0) target = $region25
    $region24: #{tpu_custom_call.1} parent=1 // pred_region
      _
    $region25: #{tpu_custom_call.1} parent=1 // pred_fallthru
      _
    %v25 = vld [vmem:[%s0] sm:$0x1]
    %v26 = vld [vmem:[%s0 + $0x1] sm:$0x1]
    %v27 = vld [vmem:[%s1] sm:$0xff]
    %v28 = vld [vmem:[%s1 + $0x8] sm:$0xff]
    %v29 = vld [vmem:[%s1 + $0x10] sm:$0xff]
    %v30 = vld [vmem:[%s1 + $0x18] sm:$0xff]
    %v31 = vld [vmem:[%s1 + $0x20] sm:$0xff]
    %v32 = vld [vmem:[%s1 + $0x28] sm:$0xff]
    %v33 = vld [vmem:[%s1 + $0x30] sm:$0xff]
    %v34 = vld [vmem:[%s1 + $0x38] sm:$0xff]
    %36 = vset.pattern.permute.xlu0 0
    %37 = vperm.xlu0 %36, %v27
    %v38 = vpop.permute.xlu0 %37
    %41 = vset.pattern.permute.xlu0 0
    %42 = vperm.xlu0 %41, %v28
    %v43 = vpop.permute.xlu0 %42
    %46 = vset.pattern.permute.xlu0 0
    %47 = vperm.xlu0 %46, %v29
    %v48 = vpop.permute.xlu0 %47
    %51 = vset.pattern.permute.xlu0 0
    %52 = vperm.xlu0 %51, %v30
    %v53 = vpop.permute.xlu0 %52
    %56 = vset.pattern.permute.xlu0 0
    %57 = vperm.xlu0 %56, %v31
    %v58 = vpop.permute.xlu0 %57
    %61 = vset.pattern.permute.xlu0 0
    %62 = vperm.xlu0 %61, %v32
    %v63 = vpop.permute.xlu0 %62
    %66 = vset.pattern.permute.xlu0 0
    %67 = vperm.xlu0 %66, %v33
    %v68 = vpop.permute.xlu0 %67
    %71 = vset.pattern.permute.xlu0 0
    %72 = vperm.xlu0 %71, %v34
    %v73 = vpop.permute.xlu0 %72
    %v75 = vperm.slane %v25, 0
    %v76 = vmul.f32 %v38, %v75
    %v77 = vmul.f32 %v43, %v75
    %v78 = vmul.f32 %v48, %v75
    %v79 = vmul.f32 %v53, %v75
    %v80 = vmul.f32 %v58, %v75
    %v81 = vmul.f32 %v63, %v75
    %v82 = vmul.f32 %v68, %v75
    %v83 = vmul.f32 %v73, %v75
    %v84 = vld [vmem:[%s2] sm:$0xff]
    %v85 = vld [vmem:[%s2 + $0x8] sm:$0xff]
    %v86 = vld [vmem:[%s2 + $0x10] sm:$0xff]
    %v87 = vld [vmem:[%s2 + $0x18] sm:$0xff]
    %v88 = vld [vmem:[%s2 + $0x20] sm:$0xff]
    %v89 = vld [vmem:[%s2 + $0x28] sm:$0xff]
    %v90 = vld [vmem:[%s2 + $0x30] sm:$0xff]
    %v91 = vld [vmem:[%s2 + $0x38] sm:$0xff]
    %93 = vset.pattern.permute.xlu0 0
    %94 = vperm.xlu0 %93, %v84
    %v95 = vpop.permute.xlu0 %94
    %98 = vset.pattern.permute.xlu0 0
    %99 = vperm.xlu0 %98, %v85
    %v100 = vpop.permute.xlu0 %99
    %103 = vset.pattern.permute.xlu0 0
    %104 = vperm.xlu0 %103, %v86
    %v105 = vpop.permute.xlu0 %104
    %108 = vset.pattern.permute.xlu0 0
    %109 = vperm.xlu0 %108, %v87
    %v110 = vpop.permute.xlu0 %109
    %113 = vset.pattern.permute.xlu0 0
    %114 = vperm.xlu0 %113, %v88
    %v115 = vpop.permute.xlu0 %114
    %118 = vset.pattern.permute.xlu0 0
    %119 = vperm.xlu0 %118, %v89
    %v120 = vpop.permute.xlu0 %119
    %123 = vset.pattern.permute.xlu0 0
    %124 = vperm.xlu0 %123, %v90
    %v125 = vpop.permute.xlu0 %124
    %128 = vset.pattern.permute.xlu0 0
    %129 = vperm.xlu0 %128, %v91
    %v130 = vpop.permute.xlu0 %129
    %v132 = vperm.slane %v26, 0
    %v133 = vmul.f32 %v95, %v132
    %v134 = vmul.f32 %v100, %v132
    %v135 = vmul.f32 %v105, %v132
    %v136 = vmul.f32 %v110, %v132
    %v137 = vmul.f32 %v115, %v132
    %v138 = vmul.f32 %v120, %v132
    %v139 = vmul.f32 %v125, %v132
    %v140 = vmul.f32 %v130, %v132
    %v141 = vadd.f32 %v76, %v133
    %v142 = vadd.f32 %v77, %v134
    %v143 = vadd.f32 %v78, %v135
    %v144 = vadd.f32 %v79, %v136
    %v145 = vadd.f32 %v80, %v137
    %v146 = vadd.f32 %v81, %v138
    %v147 = vadd.f32 %v82, %v139
    %v148 = vadd.f32 %v83, %v140
    %v149 = vld [vmem:[%s3] sm:$0xff]
    %v150 = vld [vmem:[%s3 + $0x8] sm:$0xff]
    %v151 = vld [vmem:[%s3 + $0x10] sm:$0xff]
    %v152 = vld [vmem:[%s3 + $0x18] sm:$0xff]
    %v153 = vld [vmem:[%s3 + $0x20] sm:$0xff]
    %v154 = vld [vmem:[%s3 + $0x28] sm:$0xff]
    %v155 = vld [vmem:[%s3 + $0x30] sm:$0xff]
    %v156 = vld [vmem:[%s3 + $0x38] sm:$0xff]
    %158 = vset.pattern.permute.xlu0 0
    %159 = vperm.xlu0 %158, %v149
    %v160 = vpop.permute.xlu0 %159
    %163 = vset.pattern.permute.xlu0 0
    %164 = vperm.xlu0 %163, %v150
    %v165 = vpop.permute.xlu0 %164
    %168 = vset.pattern.permute.xlu0 0
    %169 = vperm.xlu0 %168, %v151
    %v170 = vpop.permute.xlu0 %169
    %173 = vset.pattern.permute.xlu0 0
    %174 = vperm.xlu0 %173, %v152
    %v175 = vpop.permute.xlu0 %174
    %178 = vset.pattern.permute.xlu0 0
    %179 = vperm.xlu0 %178, %v153
    %v180 = vpop.permute.xlu0 %179
    %183 = vset.pattern.permute.xlu0 0
    %184 = vperm.xlu0 %183, %v154
    %v185 = vpop.permute.xlu0 %184
    %188 = vset.pattern.permute.xlu0 0
    %189 = vperm.xlu0 %188, %v155
    %v190 = vpop.permute.xlu0 %189
    %193 = vset.pattern.permute.xlu0 0
    %194 = vperm.xlu0 %193, %v156
    %v195 = vpop.permute.xlu0 %194
    %v197 = vadd.f32 %v141, %v160
    %v198 = vadd.f32 %v142, %v165
    %v199 = vadd.f32 %v143, %v170
    %v200 = vadd.f32 %v144, %v175
    %v201 = vadd.f32 %v145, %v180
    %v202 = vadd.f32 %v146, %v185
    %v203 = vadd.f32 %v147, %v190
    %v204 = vadd.f32 %v148, %v195
    %v205 = vand.u32 2147483647, %v197
    %vm206 = vcmp.le.f32.partialorder %v205, 0.7853982
    %vm207 = vcmp.lt.s32.totalorder %v197, 0
    %v208 = vand.u32 %v197, 2139095040
    %v209 = vshrl.u32 %v208, 23
    %v210 = vsub.s32 %v209, 127
    %v211 = vand.u32 2147483647, %v197
    %v212 = vand.u32 %v211, 8388607
    %v213 = vor.u32 %v212, 8388608
    %v214 = vsub.s32 0, %v213
    %v215 = vadd.s32 %v210, 1
    %vm216 = vcmp.gt.s32.totalorder %v215, 0
    %v217 = vsel %vm216, %v215, 0
    %v218 = vshrl.u32 %v217, 5
    %v219 = vand.u32 %v217, 31
    %v220 = vsub.s32 32, %v219
    %v221 = vshrl.u32 683565275, %v220
    %v222 = vshll.u32 683565275, %v219
    %v223 = vshrl.u32 2475754826, %v220
    %v224 = vor.u32 %v222, %v223
    %v225 = vshll.u32 2475754826, %v219
    %v226 = vshrl.u32 2131351028, %v220
    %v227 = vor.u32 %v225, %v226
    %v228 = vshll.u32 2131351028, %v219
    %v229 = vshrl.u32 2102212464, %v220
    %v230 = vor.u32 %v228, %v229
    %v231 = vshll.u32 2102212464, %v219
    %v232 = vshrl.u32 920167782, %v220
    %v233 = vor.u32 %v231, %v232
    %v234 = vshll.u32 920167782, %v219
    %v235 = vshrl.u32 1326507024, %v220
    %v236 = vor.u32 %v234, %v235
    %vm237 = vcmp.lt.s32.totalorder %v218, 1
    %vm238 = vcmp.lt.s32.totalorder %v218, 2
    %vm239 = vcmp.lt.s32.totalorder %v218, 3
    %vm240 = vcmp.lt.s32.totalorder %v218, 4
    %v241 = vsel %vm237, %v221, %v224
    %v242 = vsel %vm240, %v230, 2102212464
    %v243 = vsel %vm239, %v227, %v242
    %v244 = vsel %vm238, %v241, %v243
    %v245 = vsel %vm237, %v224, %v227
    %v246 = vsel %vm240, %v233, 920167782
    %v247 = vsel %vm239, %v230, %v246
    %v248 = vsel %vm238, %v245, %v247
    %v249 = vsel %vm237, %v227, %v230
    %v250 = vsel %vm240, %v236, 1326507024
    %v251 = vsel %vm239, %v233, %v250
    %v252 = vsel %vm238, %v249, %v251
    %v253 = vshll.u32 %v213, 8
    %v254 = vand.u32 %v253, 65535
    %v255 = vshrl.u32 %v253, 16
    %v256 = vand.u32 %v252, 65535
    %v257 = vshrl.u32 %v252, 16
    %v258 = vmul.u32 %v254, %v256
    %v259 = vmul.u32 %v254, %v257
    %v260 = vmul.u32 %v255, %v256
    %v261 = vmul.u32 %v255, %v257
    %v262 = vshll.u32 %v259, 16
    %v263 = vshrl.u32 %v259, 16
    %v264 = vshll.u32 %v260, 16
    %v265 = vshrl.u32 %v260, 16
    %vm266 = vc.u32 %v258, %v262
    %v267 = vsel %vm266, 1, 0
    %v268 = vadd.s32 %v258, %v262
    %v269 = vadd.s32 %v261, %v267
    %vm270 = vc.u32 %v268, %v264
    %v271 = vsel %vm270, 1, 0
    %v272 = vadd.s32 %v268, %v264
    %v273 = vadd.s32 %v269, %v271
    %v274 = vadd.s32 %v273, %v263
    %v275 = vadd.s32 %v274, %v265
    %v276 = vand.u32 %v253, 65535
    %v277 = vshrl.u32 %v253, 16
    %v278 = vand.u32 %v248, 65535
    %v279 = vshrl.u32 %v248, 16
    %v280 = vmul.u32 %v276, %v278
    %v281 = vmul.u32 %v276, %v279
    %v282 = vmul.u32 %v277, %v278
    %v283 = vmul.u32 %v277, %v279
    %v284 = vshll.u32 %v281, 16
    %v285 = vshrl.u32 %v281, 16
    %v286 = vshll.u32 %v282, 16
    %v287 = vshrl.u32 %v282, 16
    %vm288 = vc.u32 %v280, %v284
    %v289 = vsel %vm288, 1, 0
    %v290 = vadd.s32 %v280, %v284
    %v291 = vadd.s32 %v283, %v289
    %vm292 = vc.u32 %v290, %v286
    %v293 = vsel %vm292, 1, 0
    %v294 = vadd.s32 %v290, %v286
    %v295 = vadd.s32 %v291, %v293
    %v296 = vadd.s32 %v295, %v285
    %v297 = vadd.s32 %v296, %v287
    %v298 = vmul.u32 %v253, %v244
    %v299 = vadd.s32 %v275, %v294
    %vm300 = vc.u32 %v275, %v294
    %v301 = vadd.s32 %v297, 1
    %v302 = vsel %vm300, %v301, %v297
    %v303 = vadd.s32 %v298, %v302
    %v304 = vadd.s32 %v303, 536870912
    %v305 = vshrl.u32 %v304, 30
    %v306 = vshll.u32 %v305, 30
    %v307 = vsub.s32 %v303, %v306
    %vm308 = vcmp.lt.s32.totalorder %v307, 0
    %v309 = vsub.s32 0, %v307
    %v310 = vsel %vm308, %v309, %v307
    %v311 = vclz %v310
    %v312 = vsub.s32 %v311, 2
    %vm313 = vcmp.gt.s32.totalorder 0, %v312
    %v314 = vsel %vm313, 0, %v312
    %v315 = vsub.s32 32, %v314
    %v316 = vshll.u32 %v307, %v314
    %v317 = vshrl.u32 %v299, %v315
    %v318 = vor.u32 %v316, %v317
    %v319 = vsub.s32 4294967266, %v314
    %v320 = vadd.s32 %v319, 127
    %v321 = vshll.u32 %v320, 23
    %v322 = vor.u32 4788187, %v321
    %v323 = vand.u32 2147483647, %v322
    %v325 = vcvt.s32.f32 %v318
    %v326 = vmul.f32 %v325, %v323
    %v327 = vxor.u32 %v326, 2147483648
    %v328 = vsel %vm207, %v327, %v326
    %v329 = vsub.s32 4, %v305
    %v330 = vsel %vm207, %v329, %v305
    %v331 = vsel %vm206, %v197, %v328
    %v332 = vsel %vm206, 0, %v330
    %v333 = vmul.f32 %v331, %v331
    %v334 = vmul.f32 %v333, -0.001358992
    %v335 = vadd.f32 %v334, 0.041655596
    %v336 = vmul.f32 %v333, %v335
    %v337 = vadd.f32 %v336, -0.4999988
    %v338 = vmul.f32 %v333, %v337
    %v339 = vadd.f32 1.0, %v338
    %v340 = vmul.f32 %v331, %v331
    %v341 = vmul.f32 %v340, -0.00019511016
    %v342 = vadd.f32 %v341, 0.008332121
    %v343 = vmul.f32 %v340, %v342
    %v344 = vadd.f32 %v343, -0.16666654
    %v345 = vmul.f32 %v340, %v344
    %v346 = vadd.f32 %v345, 1.0
    %v347 = vmul.f32 %v346, %v331
    %vm348 = vweird.f32 %v197
    %v349 = vadd.s32 %v332, 3
    %v350 = vand.u32 %v349, 3
    %vm351 = vcmp.lt.s32.totalorder %v350, 2
    %vm352 = vcmp.eq.s32.totalorder %v350, 0
    %v353 = vxor.u32 %v347, 2147483648
    %v354 = vsel %vm352, %v339, %v353
    %vm355 = vcmp.eq.s32.totalorder %v350, 2
    %v356 = vxor.u32 %v339, 2147483648
    %v357 = vsel %vm355, %v356, %v347
    %v358 = vsel %vm351, %v354, %v357
    %v359 = vsel %vm348, nan, %v358
    %v360 = vand.u32 2147483647, %v198
    %vm361 = vcmp.le.f32.partialorder %v360, 0.7853982
    %vm362 = vcmp.lt.s32.totalorder %v198, 0
    %v363 = vand.u32 %v198, 2139095040
    %v364 = vshrl.u32 %v363, 23
    %v365 = vsub.s32 %v364, 127
    %v366 = vand.u32 2147483647, %v198
    %v367 = vand.u32 %v366, 8388607
    %v368 = vor.u32 %v367, 8388608
    %v369 = vsub.s32 0, %v368
    %v370 = vadd.s32 %v365, 1
    %vm371 = vcmp.gt.s32.totalorder %v370, 0
    %v372 = vsel %vm371, %v370, 0
    %v373 = vshrl.u32 %v372, 5
    %v374 = vand.u32 %v372, 31
    %v375 = vsub.s32 32, %v374
    %v376 = vshrl.u32 683565275, %v375
    %v377 = vshll.u32 683565275, %v374
    %v378 = vshrl.u32 2475754826, %v375
    %v379 = vor.u32 %v377, %v378
    %v380 = vshll.u32 2475754826, %v374
    %v381 = vshrl.u32 2131351028, %v375
    %v382 = vor.u32 %v380, %v381
    %v383 = vshll.u32 2131351028, %v374
    %v384 = vshrl.u32 2102212464, %v375
    %v385 = vor.u32 %v383, %v384
    %v386 = vshll.u32 2102212464, %v374
    %v387 = vshrl.u32 920167782, %v375
    %v388 = vor.u32 %v386, %v387
    %v389 = vshll.u32 920167782, %v374
    %v390 = vshrl.u32 1326507024, %v375
    %v391 = vor.u32 %v389, %v390
    %vm392 = vcmp.lt.s32.totalorder %v373, 1
    %vm393 = vcmp.lt.s32.totalorder %v373, 2
    %vm394 = vcmp.lt.s32.totalorder %v373, 3
    %vm395 = vcmp.lt.s32.totalorder %v373, 4
    %v396 = vsel %vm392, %v376, %v379
    %v397 = vsel %vm395, %v385, 2102212464
    %v398 = vsel %vm394, %v382, %v397
    %v399 = vsel %vm393, %v396, %v398
    %v400 = vsel %vm392, %v379, %v382
    %v401 = vsel %vm395, %v388, 920167782
    %v402 = vsel %vm394, %v385, %v401
    %v403 = vsel %vm393, %v400, %v402
    %v404 = vsel %vm392, %v382, %v385
    %v405 = vsel %vm395, %v391, 1326507024
    %v406 = vsel %vm394, %v388, %v405
    %v407 = vsel %vm393, %v404, %v406
    %v408 = vshll.u32 %v368, 8
    %v409 = vand.u32 %v408, 65535
    %v410 = vshrl.u32 %v408, 16
    %v411 = vand.u32 %v407, 65535
    %v412 = vshrl.u32 %v407, 16
    %v413 = vmul.u32 %v409, %v411
    %v414 = vmul.u32 %v409, %v412
    %v415 = vmul.u32 %v410, %v411
    %v416 = vmul.u32 %v410, %v412
    %v417 = vshll.u32 %v414, 16
    %v418 = vshrl.u32 %v414, 16
    %v419 = vshll.u32 %v415, 16
    %v420 = vshrl.u32 %v415, 16
    %vm421 = vc.u32 %v413, %v417
    %v422 = vsel %vm421, 1, 0
    %v423 = vadd.s32 %v413, %v417
    %v424 = vadd.s32 %v416, %v422
    %vm425 = vc.u32 %v423, %v419
    %v426 = vsel %vm425, 1, 0
    %v427 = vadd.s32 %v423, %v419
    %v428 = vadd.s32 %v424, %v426
    %v429 = vadd.s32 %v428, %v418
    %v430 = vadd.s32 %v429, %v420
    %v431 = vand.u32 %v408, 65535
    %v432 = vshrl.u32 %v408, 16
    %v433 = vand.u32 %v403, 65535
    %v434 = vshrl.u32 %v403, 16
    %v435 = vmul.u32 %v431, %v433
    %v436 = vmul.u32 %v431, %v434
    %v437 = vmul.u32 %v432, %v433
    %v438 = vmul.u32 %v432, %v434
    %v439 = vshll.u32 %v436, 16
    %v440 = vshrl.u32 %v436, 16
    %v441 = vshll.u32 %v437, 16
    %v442 = vshrl.u32 %v437, 16
    %vm443 = vc.u32 %v435, %v439
    %v444 = vsel %vm443, 1, 0
    %v445 = vadd.s32 %v435, %v439
    %v446 = vadd.s32 %v438, %v444
    %vm447 = vc.u32 %v445, %v441
    %v448 = vsel %vm447, 1, 0
    %v449 = vadd.s32 %v445, %v441
    %v450 = vadd.s32 %v446, %v448
    %v451 = vadd.s32 %v450, %v440
    %v452 = vadd.s32 %v451, %v442
    %v453 = vmul.u32 %v408, %v399
    %v454 = vadd.s32 %v430, %v449
    %vm455 = vc.u32 %v430, %v449
    %v456 = vadd.s32 %v452, 1
    %v457 = vsel %vm455, %v456, %v452
    %v458 = vadd.s32 %v453, %v457
    %v459 = vadd.s32 %v458, 536870912
    %v460 = vshrl.u32 %v459, 30
    %v461 = vshll.u32 %v460, 30
    %v462 = vsub.s32 %v458, %v461
    %vm463 = vcmp.lt.s32.totalorder %v462, 0
    %v464 = vsub.s32 0, %v462
    %v465 = vsel %vm463, %v464, %v462
    %v466 = vclz %v465
    %v467 = vsub.s32 %v466, 2
    %vm468 = vcmp.gt.s32.totalorder 0, %v467
    %v469 = vsel %vm468, 0, %v467
    %v470 = vsub.s32 32, %v469
    %v471 = vshll.u32 %v462, %v469
    %v472 = vshrl.u32 %v454, %v470
    %v473 = vor.u32 %v471, %v472
    %v474 = vsub.s32 4294967266, %v469
    %v475 = vadd.s32 %v474, 127
    %v476 = vshll.u32 %v475, 23
    %v477 = vor.u32 4788187, %v476
    %v478 = vand.u32 2147483647, %v477
    %v480 = vcvt.s32.f32 %v473
    %v481 = vmul.f32 %v480, %v478
    %v482 = vxor.u32 %v481, 2147483648
    %v483 = vsel %vm362, %v482, %v481
    %v484 = vsub.s32 4, %v460
    %v485 = vsel %vm362, %v484, %v460
    %v486 = vsel %vm361, %v198, %v483
    %v487 = vsel %vm361, 0, %v485
    %v488 = vmul.f32 %v486, %v486
    %v489 = vmul.f32 %v488, -0.001358992
    %v490 = vadd.f32 %v489, 0.041655596
    %v491 = vmul.f32 %v488, %v490
    %v492 = vadd.f32 %v491, -0.4999988
    %v493 = vmul.f32 %v488, %v492
    %v494 = vadd.f32 1.0, %v493
    %v495 = vmul.f32 %v486, %v486
    %v496 = vmul.f32 %v495, -0.00019511016
    %v497 = vadd.f32 %v496, 0.008332121
    %v498 = vmul.f32 %v495, %v497
    %v499 = vadd.f32 %v498, -0.16666654
    %v500 = vmul.f32 %v495, %v499
    %v501 = vadd.f32 %v500, 1.0
    %v502 = vmul.f32 %v501, %v486
    %vm503 = vweird.f32 %v198
    %v504 = vadd.s32 %v487, 3
    %v505 = vand.u32 %v504, 3
    %vm506 = vcmp.lt.s32.totalorder %v505, 2
    %vm507 = vcmp.eq.s32.totalorder %v505, 0
    %v508 = vxor.u32 %v502, 2147483648
    %v509 = vsel %vm507, %v494, %v508
    %vm510 = vcmp.eq.s32.totalorder %v505, 2
    %v511 = vxor.u32 %v494, 2147483648
    %v512 = vsel %vm510, %v511, %v502
    %v513 = vsel %vm506, %v509, %v512
    %v514 = vsel %vm503, nan, %v513
    %v515 = vand.u32 2147483647, %v199
    %vm516 = vcmp.le.f32.partialorder %v515, 0.7853982
    %vm517 = vcmp.lt.s32.totalorder %v199, 0
    %v518 = vand.u32 %v199, 2139095040
    %v519 = vshrl.u32 %v518, 23
    %v520 = vsub.s32 %v519, 127
    %v521 = vand.u32 2147483647, %v199
    %v522 = vand.u32 %v521, 8388607
    %v523 = vor.u32 %v522, 8388608
    %v524 = vsub.s32 0, %v523
    %v525 = vadd.s32 %v520, 1
    %vm526 = vcmp.gt.s32.totalorder %v525, 0
    %v527 = vsel %vm526, %v525, 0
    %v528 = vshrl.u32 %v527, 5
    %v529 = vand.u32 %v527, 31
    %v530 = vsub.s32 32, %v529
    %v531 = vshrl.u32 683565275, %v530
    %v532 = vshll.u32 683565275, %v529
    %v533 = vshrl.u32 2475754826, %v530
    %v534 = vor.u32 %v532, %v533
    %v535 = vshll.u32 2475754826, %v529
    %v536 = vshrl.u32 2131351028, %v530
    %v537 = vor.u32 %v535, %v536
    %v538 = vshll.u32 2131351028, %v529
    %v539 = vshrl.u32 2102212464, %v530
    %v540 = vor.u32 %v538, %v539
    %v541 = vshll.u32 2102212464, %v529
    %v542 = vshrl.u32 920167782, %v530
    %v543 = vor.u32 %v541, %v542
    %v544 = vshll.u32 920167782, %v529
    %v545 = vshrl.u32 1326507024, %v530
    %v546 = vor.u32 %v544, %v545
    %vm547 = vcmp.lt.s32.totalorder %v528, 1
    %vm548 = vcmp.lt.s32.totalorder %v528, 2
    %vm549 = vcmp.lt.s32.totalorder %v528, 3
    %vm550 = vcmp.lt.s32.totalorder %v528, 4
    %v551 = vsel %vm547, %v531, %v534
    %v552 = vsel %vm550, %v540, 2102212464
    %v553 = vsel %vm549, %v537, %v552
    %v554 = vsel %vm548, %v551, %v553
    %v555 = vsel %vm547, %v534, %v537
    %v556 = vsel %vm550, %v543, 920167782
    %v557 = vsel %vm549, %v540, %v556
    %v558 = vsel %vm548, %v555, %v557
    %v559 = vsel %vm547, %v537, %v540
    %v560 = vsel %vm550, %v546, 1326507024
    %v561 = vsel %vm549, %v543, %v560
    %v562 = vsel %vm548, %v559, %v561
    %v563 = vshll.u32 %v523, 8
    %v564 = vand.u32 %v563, 65535
    %v565 = vshrl.u32 %v563, 16
    %v566 = vand.u32 %v562, 65535
    %v567 = vshrl.u32 %v562, 16
    %v568 = vmul.u32 %v564, %v566
    %v569 = vmul.u32 %v564, %v567
    %v570 = vmul.u32 %v565, %v566
    %v571 = vmul.u32 %v565, %v567
    %v572 = vshll.u32 %v569, 16
    %v573 = vshrl.u32 %v569, 16
    %v574 = vshll.u32 %v570, 16
    %v575 = vshrl.u32 %v570, 16
    %vm576 = vc.u32 %v568, %v572
    %v577 = vsel %vm576, 1, 0
    %v578 = vadd.s32 %v568, %v572
    %v579 = vadd.s32 %v571, %v577
    %vm580 = vc.u32 %v578, %v574
    %v581 = vsel %vm580, 1, 0
    %v582 = vadd.s32 %v578, %v574
    %v583 = vadd.s32 %v579, %v581
    %v584 = vadd.s32 %v583, %v573
    %v585 = vadd.s32 %v584, %v575
    %v586 = vand.u32 %v563, 65535
    %v587 = vshrl.u32 %v563, 16
    %v588 = vand.u32 %v558, 65535
    %v589 = vshrl.u32 %v558, 16
    %v590 = vmul.u32 %v586, %v588
    %v591 = vmul.u32 %v586, %v589
    %v592 = vmul.u32 %v587, %v588
    %v593 = vmul.u32 %v587, %v589
    %v594 = vshll.u32 %v591, 16
    %v595 = vshrl.u32 %v591, 16
    %v596 = vshll.u32 %v592, 16
    %v597 = vshrl.u32 %v592, 16
    %vm598 = vc.u32 %v590, %v594
    %v599 = vsel %vm598, 1, 0
    %v600 = vadd.s32 %v590, %v594
    %v601 = vadd.s32 %v593, %v599
    %vm602 = vc.u32 %v600, %v596
    %v603 = vsel %vm602, 1, 0
    %v604 = vadd.s32 %v600, %v596
    %v605 = vadd.s32 %v601, %v603
    %v606 = vadd.s32 %v605, %v595
    %v607 = vadd.s32 %v606, %v597
    %v608 = vmul.u32 %v563, %v554
    %v609 = vadd.s32 %v585, %v604
    %vm610 = vc.u32 %v585, %v604
    %v611 = vadd.s32 %v607, 1
    %v612 = vsel %vm610, %v611, %v607
    %v613 = vadd.s32 %v608, %v612
    %v614 = vadd.s32 %v613, 536870912
    %v615 = vshrl.u32 %v614, 30
    %v616 = vshll.u32 %v615, 30
    %v617 = vsub.s32 %v613, %v616
    %vm618 = vcmp.lt.s32.totalorder %v617, 0
    %v619 = vsub.s32 0, %v617
    %v620 = vsel %vm618, %v619, %v617
    %v621 = vclz %v620
    %v622 = vsub.s32 %v621, 2
    %vm623 = vcmp.gt.s32.totalorder 0, %v622
    %v624 = vsel %vm623, 0, %v622
    %v625 = vsub.s32 32, %v624
    %v626 = vshll.u32 %v617, %v624
    %v627 = vshrl.u32 %v609, %v625
    %v628 = vor.u32 %v626, %v627
    %v629 = vsub.s32 4294967266, %v624
    %v630 = vadd.s32 %v629, 127
    %v631 = vshll.u32 %v630, 23
    %v632 = vor.u32 4788187, %v631
    %v633 = vand.u32 2147483647, %v632
    %v635 = vcvt.s32.f32 %v628
    %v636 = vmul.f32 %v635, %v633
    %v637 = vxor.u32 %v636, 2147483648
    %v638 = vsel %vm517, %v637, %v636
    %v639 = vsub.s32 4, %v615
    %v640 = vsel %vm517, %v639, %v615
    %v641 = vsel %vm516, %v199, %v638
    %v642 = vsel %vm516, 0, %v640
    %v643 = vmul.f32 %v641, %v641
    %v644 = vmul.f32 %v643, -0.001358992
    %v645 = vadd.f32 %v644, 0.041655596
    %v646 = vmul.f32 %v643, %v645
    %v647 = vadd.f32 %v646, -0.4999988
    %v648 = vmul.f32 %v643, %v647
    %v649 = vadd.f32 1.0, %v648
    %v650 = vmul.f32 %v641, %v641
    %v651 = vmul.f32 %v650, -0.00019511016
    %v652 = vadd.f32 %v651, 0.008332121
    %v653 = vmul.f32 %v650, %v652
    %v654 = vadd.f32 %v653, -0.16666654
    %v655 = vmul.f32 %v650, %v654
    %v656 = vadd.f32 %v655, 1.0
    %v657 = vmul.f32 %v656, %v641
    %vm658 = vweird.f32 %v199
    %v659 = vadd.s32 %v642, 3
    %v660 = vand.u32 %v659, 3
    %vm661 = vcmp.lt.s32.totalorder %v660, 2
    %vm662 = vcmp.eq.s32.totalorder %v660, 0
    %v663 = vxor.u32 %v657, 2147483648
    %v664 = vsel %vm662, %v649, %v663
    %vm665 = vcmp.eq.s32.totalorder %v660, 2
    %v666 = vxor.u32 %v649, 2147483648
    %v667 = vsel %vm665, %v666, %v657
    %v668 = vsel %vm661, %v664, %v667
    %v669 = vsel %vm658, nan, %v668
    %v670 = vand.u32 2147483647, %v200
    %vm671 = vcmp.le.f32.partialorder %v670, 0.7853982
    %vm672 = vcmp.lt.s32.totalorder %v200, 0
    %v673 = vand.u32 %v200, 2139095040
    %v674 = vshrl.u32 %v673, 23
    %v675 = vsub.s32 %v674, 127
    %v676 = vand.u32 2147483647, %v200
    %v677 = vand.u32 %v676, 8388607
    %v678 = vor.u32 %v677, 8388608
    %v679 = vsub.s32 0, %v678
    %v680 = vadd.s32 %v675, 1
    %vm681 = vcmp.gt.s32.totalorder %v680, 0
    %v682 = vsel %vm681, %v680, 0
    %v683 = vshrl.u32 %v682, 5
    %v684 = vand.u32 %v682, 31
    %v685 = vsub.s32 32, %v684
    %v686 = vshrl.u32 683565275, %v685
    %v687 = vshll.u32 683565275, %v684
    %v688 = vshrl.u32 2475754826, %v685
    %v689 = vor.u32 %v687, %v688
    %v690 = vshll.u32 2475754826, %v684
    %v691 = vshrl.u32 2131351028, %v685
    %v692 = vor.u32 %v690, %v691
    %v693 = vshll.u32 2131351028, %v684
    %v694 = vshrl.u32 2102212464, %v685
    %v695 = vor.u32 %v693, %v694
    %v696 = vshll.u32 2102212464, %v684
    %v697 = vshrl.u32 920167782, %v685
    %v698 = vor.u32 %v696, %v697
    %v699 = vshll.u32 920167782, %v684
    %v700 = vshrl.u32 1326507024, %v685
    %v701 = vor.u32 %v699, %v700
    %vm702 = vcmp.lt.s32.totalorder %v683, 1
    %vm703 = vcmp.lt.s32.totalorder %v683, 2
    %vm704 = vcmp.lt.s32.totalorder %v683, 3
    %vm705 = vcmp.lt.s32.totalorder %v683, 4
    %v706 = vsel %vm702, %v686, %v689
    %v707 = vsel %vm705, %v695, 2102212464
    %v708 = vsel %vm704, %v692, %v707
    %v709 = vsel %vm703, %v706, %v708
    %v710 = vsel %vm702, %v689, %v692
    %v711 = vsel %vm705, %v698, 920167782
    %v712 = vsel %vm704, %v695, %v711
    %v713 = vsel %vm703, %v710, %v712
    %v714 = vsel %vm702, %v692, %v695
    %v715 = vsel %vm705, %v701, 1326507024
    %v716 = vsel %vm704, %v698, %v715
    %v717 = vsel %vm703, %v714, %v716
    %v718 = vshll.u32 %v678, 8
    %v719 = vand.u32 %v718, 65535
    %v720 = vshrl.u32 %v718, 16
    %v721 = vand.u32 %v717, 65535
    %v722 = vshrl.u32 %v717, 16
    %v723 = vmul.u32 %v719, %v721
    %v724 = vmul.u32 %v719, %v722
    %v725 = vmul.u32 %v720, %v721
    %v726 = vmul.u32 %v720, %v722
    %v727 = vshll.u32 %v724, 16
    %v728 = vshrl.u32 %v724, 16
    %v729 = vshll.u32 %v725, 16
    %v730 = vshrl.u32 %v725, 16
    %vm731 = vc.u32 %v723, %v727
    %v732 = vsel %vm731, 1, 0
    %v733 = vadd.s32 %v723, %v727
    %v734 = vadd.s32 %v726, %v732
    %vm735 = vc.u32 %v733, %v729
    %v736 = vsel %vm735, 1, 0
    %v737 = vadd.s32 %v733, %v729
    %v738 = vadd.s32 %v734, %v736
    %v739 = vadd.s32 %v738, %v728
    %v740 = vadd.s32 %v739, %v730
    %v741 = vand.u32 %v718, 65535
    %v742 = vshrl.u32 %v718, 16
    %v743 = vand.u32 %v713, 65535
    %v744 = vshrl.u32 %v713, 16
    %v745 = vmul.u32 %v741, %v743
    %v746 = vmul.u32 %v741, %v744
    %v747 = vmul.u32 %v742, %v743
    %v748 = vmul.u32 %v742, %v744
    %v749 = vshll.u32 %v746, 16
    %v750 = vshrl.u32 %v746, 16
    %v751 = vshll.u32 %v747, 16
    %v752 = vshrl.u32 %v747, 16
    %vm753 = vc.u32 %v745, %v749
    %v754 = vsel %vm753, 1, 0
    %v755 = vadd.s32 %v745, %v749
    %v756 = vadd.s32 %v748, %v754
    %vm757 = vc.u32 %v755, %v751
    %v758 = vsel %vm757, 1, 0
    %v759 = vadd.s32 %v755, %v751
    %v760 = vadd.s32 %v756, %v758
    %v761 = vadd.s32 %v760, %v750
    %v762 = vadd.s32 %v761, %v752
    %v763 = vmul.u32 %v718, %v709
    %v764 = vadd.s32 %v740, %v759
    %vm765 = vc.u32 %v740, %v759
    %v766 = vadd.s32 %v762, 1
    %v767 = vsel %vm765, %v766, %v762
    %v768 = vadd.s32 %v763, %v767
    %v769 = vadd.s32 %v768, 536870912
    %v770 = vshrl.u32 %v769, 30
    %v771 = vshll.u32 %v770, 30
    %v772 = vsub.s32 %v768, %v771
    %vm773 = vcmp.lt.s32.totalorder %v772, 0
    %v774 = vsub.s32 0, %v772
    %v775 = vsel %vm773, %v774, %v772
    %v776 = vclz %v775
    %v777 = vsub.s32 %v776, 2
    %vm778 = vcmp.gt.s32.totalorder 0, %v777
    %v779 = vsel %vm778, 0, %v777
    %v780 = vsub.s32 32, %v779
    %v781 = vshll.u32 %v772, %v779
    %v782 = vshrl.u32 %v764, %v780
    %v783 = vor.u32 %v781, %v782
    %v784 = vsub.s32 4294967266, %v779
    %v785 = vadd.s32 %v784, 127
    %v786 = vshll.u32 %v785, 23
    %v787 = vor.u32 4788187, %v786
    %v788 = vand.u32 2147483647, %v787
    %v790 = vcvt.s32.f32 %v783
    %v791 = vmul.f32 %v790, %v788
    %v792 = vxor.u32 %v791, 2147483648
    %v793 = vsel %vm672, %v792, %v791
    %v794 = vsub.s32 4, %v770
    %v795 = vsel %vm672, %v794, %v770
    %v796 = vsel %vm671, %v200, %v793
    %v797 = vsel %vm671, 0, %v795
    %v798 = vmul.f32 %v796, %v796
    %v799 = vmul.f32 %v798, -0.001358992
    %v800 = vadd.f32 %v799, 0.041655596
    %v801 = vmul.f32 %v798, %v800
    %v802 = vadd.f32 %v801, -0.4999988
    %v803 = vmul.f32 %v798, %v802
    %v804 = vadd.f32 1.0, %v803
    %v805 = vmul.f32 %v796, %v796
    %v806 = vmul.f32 %v805, -0.00019511016
    %v807 = vadd.f32 %v806, 0.008332121
    %v808 = vmul.f32 %v805, %v807
    %v809 = vadd.f32 %v808, -0.16666654
    %v810 = vmul.f32 %v805, %v809
    %v811 = vadd.f32 %v810, 1.0
    %v812 = vmul.f32 %v811, %v796
    %vm813 = vweird.f32 %v200
    %v814 = vadd.s32 %v797, 3
    %v815 = vand.u32 %v814, 3
    %vm816 = vcmp.lt.s32.totalorder %v815, 2
    %vm817 = vcmp.eq.s32.totalorder %v815, 0
    %v818 = vxor.u32 %v812, 2147483648
    %v819 = vsel %vm817, %v804, %v818
    %vm820 = vcmp.eq.s32.totalorder %v815, 2
    %v821 = vxor.u32 %v804, 2147483648
    %v822 = vsel %vm820, %v821, %v812
    %v823 = vsel %vm816, %v819, %v822
    %v824 = vsel %vm813, nan, %v823
    %v825 = vand.u32 2147483647, %v201
    %vm826 = vcmp.le.f32.partialorder %v825, 0.7853982
    %vm827 = vcmp.lt.s32.totalorder %v201, 0
    %v828 = vand.u32 %v201, 2139095040
    %v829 = vshrl.u32 %v828, 23
    %v830 = vsub.s32 %v829, 127
    %v831 = vand.u32 2147483647, %v201
    %v832 = vand.u32 %v831, 8388607
    %v833 = vor.u32 %v832, 8388608
    %v834 = vsub.s32 0, %v833
    %v835 = vadd.s32 %v830, 1
    %vm836 = vcmp.gt.s32.totalorder %v835, 0
    %v837 = vsel %vm836, %v835, 0
    %v838 = vshrl.u32 %v837, 5
    %v839 = vand.u32 %v837, 31
    %v840 = vsub.s32 32, %v839
    %v841 = vshrl.u32 683565275, %v840
    %v842 = vshll.u32 683565275, %v839
    %v843 = vshrl.u32 2475754826, %v840
    %v844 = vor.u32 %v842, %v843
    %v845 = vshll.u32 2475754826, %v839
    %v846 = vshrl.u32 2131351028, %v840
    %v847 = vor.u32 %v845, %v846
    %v848 = vshll.u32 2131351028, %v839
    %v849 = vshrl.u32 2102212464, %v840
    %v850 = vor.u32 %v848, %v849
    %v851 = vshll.u32 2102212464, %v839
    %v852 = vshrl.u32 920167782, %v840
    %v853 = vor.u32 %v851, %v852
    %v854 = vshll.u32 920167782, %v839
    %v855 = vshrl.u32 1326507024, %v840
    %v856 = vor.u32 %v854, %v855
    %vm857 = vcmp.lt.s32.totalorder %v838, 1
    %vm858 = vcmp.lt.s32.totalorder %v838, 2
    %vm859 = vcmp.lt.s32.totalorder %v838, 3
    %vm860 = vcmp.lt.s32.totalorder %v838, 4
    %v861 = vsel %vm857, %v841, %v844
    %v862 = vsel %vm860, %v850, 2102212464
    %v863 = vsel %vm859, %v847, %v862
    %v864 = vsel %vm858, %v861, %v863
    %v865 = vsel %vm857, %v844, %v847
    %v866 = vsel %vm860, %v853, 920167782
    %v867 = vsel %vm859, %v850, %v866
    %v868 = vsel %vm858, %v865, %v867
    %v869 = vsel %vm857, %v847, %v850
    %v870 = vsel %vm860, %v856, 1326507024
    %v871 = vsel %vm859, %v853, %v870
    %v872 = vsel %vm858, %v869, %v871
    %v873 = vshll.u32 %v833, 8
    %v874 = vand.u32 %v873, 65535
    %v875 = vshrl.u32 %v873, 16
    %v876 = vand.u32 %v872, 65535
    %v877 = vshrl.u32 %v872, 16
    %v878 = vmul.u32 %v874, %v876
    %v879 = vmul.u32 %v874, %v877
    %v880 = vmul.u32 %v875, %v876
    %v881 = vmul.u32 %v875, %v877
    %v882 = vshll.u32 %v879, 16
    %v883 = vshrl.u32 %v879, 16
    %v884 = vshll.u32 %v880, 16
    %v885 = vshrl.u32 %v880, 16
    %vm886 = vc.u32 %v878, %v882
    %v887 = vsel %vm886, 1, 0
    %v888 = vadd.s32 %v878, %v882
    %v889 = vadd.s32 %v881, %v887
    %vm890 = vc.u32 %v888, %v884
    %v891 = vsel %vm890, 1, 0
    %v892 = vadd.s32 %v888, %v884
    %v893 = vadd.s32 %v889, %v891
    %v894 = vadd.s32 %v893, %v883
    %v895 = vadd.s32 %v894, %v885
    %v896 = vand.u32 %v873, 65535
    %v897 = vshrl.u32 %v873, 16
    %v898 = vand.u32 %v868, 65535
    %v899 = vshrl.u32 %v868, 16
    %v900 = vmul.u32 %v896, %v898
    %v901 = vmul.u32 %v896, %v899
    %v902 = vmul.u32 %v897, %v898
    %v903 = vmul.u32 %v897, %v899
    %v904 = vshll.u32 %v901, 16
    %v905 = vshrl.u32 %v901, 16
    %v906 = vshll.u32 %v902, 16
    %v907 = vshrl.u32 %v902, 16
    %vm908 = vc.u32 %v900, %v904
    %v909 = vsel %vm908, 1, 0
    %v910 = vadd.s32 %v900, %v904
    %v911 = vadd.s32 %v903, %v909
    %vm912 = vc.u32 %v910, %v906
    %v913 = vsel %vm912, 1, 0
    %v914 = vadd.s32 %v910, %v906
    %v915 = vadd.s32 %v911, %v913
    %v916 = vadd.s32 %v915, %v905
    %v917 = vadd.s32 %v916, %v907
    %v918 = vmul.u32 %v873, %v864
    %v919 = vadd.s32 %v895, %v914
    %vm920 = vc.u32 %v895, %v914
    %v921 = vadd.s32 %v917, 1
    %v922 = vsel %vm920, %v921, %v917
    %v923 = vadd.s32 %v918, %v922
    %v924 = vadd.s32 %v923, 536870912
    %v925 = vshrl.u32 %v924, 30
    %v926 = vshll.u32 %v925, 30
    %v927 = vsub.s32 %v923, %v926
    %vm928 = vcmp.lt.s32.totalorder %v927, 0
    %v929 = vsub.s32 0, %v927
    %v930 = vsel %vm928, %v929, %v927
    %v931 = vclz %v930
    %v932 = vsub.s32 %v931, 2
    %vm933 = vcmp.gt.s32.totalorder 0, %v932
    %v934 = vsel %vm933, 0, %v932
    %v935 = vsub.s32 32, %v934
    %v936 = vshll.u32 %v927, %v934
    %v937 = vshrl.u32 %v919, %v935
    %v938 = vor.u32 %v936, %v937
    %v939 = vsub.s32 4294967266, %v934
    %v940 = vadd.s32 %v939, 127
    %v941 = vshll.u32 %v940, 23
    %v942 = vor.u32 4788187, %v941
    %v943 = vand.u32 2147483647, %v942
    %v945 = vcvt.s32.f32 %v938
    %v946 = vmul.f32 %v945, %v943
    %v947 = vxor.u32 %v946, 2147483648
    %v948 = vsel %vm827, %v947, %v946
    %v949 = vsub.s32 4, %v925
    %v950 = vsel %vm827, %v949, %v925
    %v951 = vsel %vm826, %v201, %v948
    %v952 = vsel %vm826, 0, %v950
    %v953 = vmul.f32 %v951, %v951
    %v954 = vmul.f32 %v953, -0.001358992
    %v955 = vadd.f32 %v954, 0.041655596
    %v956 = vmul.f32 %v953, %v955
    %v957 = vadd.f32 %v956, -0.4999988
    %v958 = vmul.f32 %v953, %v957
    %v959 = vadd.f32 1.0, %v958
    %v960 = vmul.f32 %v951, %v951
    %v961 = vmul.f32 %v960, -0.00019511016
    %v962 = vadd.f32 %v961, 0.008332121
    %v963 = vmul.f32 %v960, %v962
    %v964 = vadd.f32 %v963, -0.16666654
    %v965 = vmul.f32 %v960, %v964
    %v966 = vadd.f32 %v965, 1.0
    %v967 = vmul.f32 %v966, %v951
    %vm968 = vweird.f32 %v201
    %v969 = vadd.s32 %v952, 3
    %v970 = vand.u32 %v969, 3
    %vm971 = vcmp.lt.s32.totalorder %v970, 2
    %vm972 = vcmp.eq.s32.totalorder %v970, 0
    %v973 = vxor.u32 %v967, 2147483648
    %v974 = vsel %vm972, %v959, %v973
    %vm975 = vcmp.eq.s32.totalorder %v970, 2
    %v976 = vxor.u32 %v959, 2147483648
    %v977 = vsel %vm975, %v976, %v967
    %v978 = vsel %vm971, %v974, %v977
    %v979 = vsel %vm968, nan, %v978
    %v980 = vand.u32 2147483647, %v202
    %vm981 = vcmp.le.f32.partialorder %v980, 0.7853982
    %vm982 = vcmp.lt.s32.totalorder %v202, 0
    %v983 = vand.u32 %v202, 2139095040
    %v984 = vshrl.u32 %v983, 23
    %v985 = vsub.s32 %v984, 127
    %v986 = vand.u32 2147483647, %v202
    %v987 = vand.u32 %v986, 8388607
    %v988 = vor.u32 %v987, 8388608
    %v989 = vsub.s32 0, %v988
    %v990 = vadd.s32 %v985, 1
    %vm991 = vcmp.gt.s32.totalorder %v990, 0
    %v992 = vsel %vm991, %v990, 0
    %v993 = vshrl.u32 %v992, 5
    %v994 = vand.u32 %v992, 31
    %v995 = vsub.s32 32, %v994
    %v996 = vshrl.u32 683565275, %v995
    %v997 = vshll.u32 683565275, %v994
    %v998 = vshrl.u32 2475754826, %v995
    %v999 = vor.u32 %v997, %v998
    %v1000 = vshll.u32 2475754826, %v994
    %v1001 = vshrl.u32 2131351028, %v995
    %v1002 = vor.u32 %v1000, %v1001
    %v1003 = vshll.u32 2131351028, %v994
    %v1004 = vshrl.u32 2102212464, %v995
    %v1005 = vor.u32 %v1003, %v1004
    %v1006 = vshll.u32 2102212464, %v994
    %v1007 = vshrl.u32 920167782, %v995
    %v1008 = vor.u32 %v1006, %v1007
    %v1009 = vshll.u32 920167782, %v994
    %v1010 = vshrl.u32 1326507024, %v995
    %v1011 = vor.u32 %v1009, %v1010
    %vm1012 = vcmp.lt.s32.totalorder %v993, 1
    %vm1013 = vcmp.lt.s32.totalorder %v993, 2
    %vm1014 = vcmp.lt.s32.totalorder %v993, 3
    %vm1015 = vcmp.lt.s32.totalorder %v993, 4
    %v1016 = vsel %vm1012, %v996, %v999
    %v1017 = vsel %vm1015, %v1005, 2102212464
    %v1018 = vsel %vm1014, %v1002, %v1017
    %v1019 = vsel %vm1013, %v1016, %v1018
    %v1020 = vsel %vm1012, %v999, %v1002
    %v1021 = vsel %vm1015, %v1008, 920167782
    %v1022 = vsel %vm1014, %v1005, %v1021
    %v1023 = vsel %vm1013, %v1020, %v1022
    %v1024 = vsel %vm1012, %v1002, %v1005
    %v1025 = vsel %vm1015, %v1011, 1326507024
    %v1026 = vsel %vm1014, %v1008, %v1025
    %v1027 = vsel %vm1013, %v1024, %v1026
    %v1028 = vshll.u32 %v988, 8
    %v1029 = vand.u32 %v1028, 65535
    %v1030 = vshrl.u32 %v1028, 16
    %v1031 = vand.u32 %v1027, 65535
    %v1032 = vshrl.u32 %v1027, 16
    %v1033 = vmul.u32 %v1029, %v1031
    %v1034 = vmul.u32 %v1029, %v1032
    %v1035 = vmul.u32 %v1030, %v1031
    %v1036 = vmul.u32 %v1030, %v1032
    %v1037 = vshll.u32 %v1034, 16
    %v1038 = vshrl.u32 %v1034, 16
    %v1039 = vshll.u32 %v1035, 16
    %v1040 = vshrl.u32 %v1035, 16
    %vm1041 = vc.u32 %v1033, %v1037
    %v1042 = vsel %vm1041, 1, 0
    %v1043 = vadd.s32 %v1033, %v1037
    %v1044 = vadd.s32 %v1036, %v1042
    %vm1045 = vc.u32 %v1043, %v1039
    %v1046 = vsel %vm1045, 1, 0
    %v1047 = vadd.s32 %v1043, %v1039
    %v1048 = vadd.s32 %v1044, %v1046
    %v1049 = vadd.s32 %v1048, %v1038
    %v1050 = vadd.s32 %v1049, %v1040
    %v1051 = vand.u32 %v1028, 65535
    %v1052 = vshrl.u32 %v1028, 16
    %v1053 = vand.u32 %v1023, 65535
    %v1054 = vshrl.u32 %v1023, 16
    %v1055 = vmul.u32 %v1051, %v1053
    %v1056 = vmul.u32 %v1051, %v1054
    %v1057 = vmul.u32 %v1052, %v1053
    %v1058 = vmul.u32 %v1052, %v1054
    %v1059 = vshll.u32 %v1056, 16
    %v1060 = vshrl.u32 %v1056, 16
    %v1061 = vshll.u32 %v1057, 16
    %v1062 = vshrl.u32 %v1057, 16
    %vm1063 = vc.u32 %v1055, %v1059
    %v1064 = vsel %vm1063, 1, 0
    %v1065 = vadd.s32 %v1055, %v1059
    %v1066 = vadd.s32 %v1058, %v1064
    %vm1067 = vc.u32 %v1065, %v1061
    %v1068 = vsel %vm1067, 1, 0
    %v1069 = vadd.s32 %v1065, %v1061
    %v1070 = vadd.s32 %v1066, %v1068
    %v1071 = vadd.s32 %v1070, %v1060
    %v1072 = vadd.s32 %v1071, %v1062
    %v1073 = vmul.u32 %v1028, %v1019
    %v1074 = vadd.s32 %v1050, %v1069
    %vm1075 = vc.u32 %v1050, %v1069
    %v1076 = vadd.s32 %v1072, 1
    %v1077 = vsel %vm1075, %v1076, %v1072
    %v1078 = vadd.s32 %v1073, %v1077
    %v1079 = vadd.s32 %v1078, 536870912
    %v1080 = vshrl.u32 %v1079, 30
    %v1081 = vshll.u32 %v1080, 30
    %v1082 = vsub.s32 %v1078, %v1081
    %vm1083 = vcmp.lt.s32.totalorder %v1082, 0
    %v1084 = vsub.s32 0, %v1082
    %v1085 = vsel %vm1083, %v1084, %v1082
    %v1086 = vclz %v1085
    %v1087 = vsub.s32 %v1086, 2
    %vm1088 = vcmp.gt.s32.totalorder 0, %v1087
    %v1089 = vsel %vm1088, 0, %v1087
    %v1090 = vsub.s32 32, %v1089
    %v1091 = vshll.u32 %v1082, %v1089
    %v1092 = vshrl.u32 %v1074, %v1090
    %v1093 = vor.u32 %v1091, %v1092
    %v1094 = vsub.s32 4294967266, %v1089
    %v1095 = vadd.s32 %v1094, 127
    %v1096 = vshll.u32 %v1095, 23
    %v1097 = vor.u32 4788187, %v1096
    %v1098 = vand.u32 2147483647, %v1097
    %v1100 = vcvt.s32.f32 %v1093
    %v1101 = vmul.f32 %v1100, %v1098
    %v1102 = vxor.u32 %v1101, 2147483648
    %v1103 = vsel %vm982, %v1102, %v1101
    %v1104 = vsub.s32 4, %v1080
    %v1105 = vsel %vm982, %v1104, %v1080
    %v1106 = vsel %vm981, %v202, %v1103
    %v1107 = vsel %vm981, 0, %v1105
    %v1108 = vmul.f32 %v1106, %v1106
    %v1109 = vmul.f32 %v1108, -0.001358992
    %v1110 = vadd.f32 %v1109, 0.041655596
    %v1111 = vmul.f32 %v1108, %v1110
    %v1112 = vadd.f32 %v1111, -0.4999988
    %v1113 = vmul.f32 %v1108, %v1112
    %v1114 = vadd.f32 1.0, %v1113
    %v1115 = vmul.f32 %v1106, %v1106
    %v1116 = vmul.f32 %v1115, -0.00019511016
    %v1117 = vadd.f32 %v1116, 0.008332121
    %v1118 = vmul.f32 %v1115, %v1117
    %v1119 = vadd.f32 %v1118, -0.16666654
    %v1120 = vmul.f32 %v1115, %v1119
    %v1121 = vadd.f32 %v1120, 1.0
    %v1122 = vmul.f32 %v1121, %v1106
    %vm1123 = vweird.f32 %v202
    %v1124 = vadd.s32 %v1107, 3
    %v1125 = vand.u32 %v1124, 3
    %vm1126 = vcmp.lt.s32.totalorder %v1125, 2
    %vm1127 = vcmp.eq.s32.totalorder %v1125, 0
    %v1128 = vxor.u32 %v1122, 2147483648
    %v1129 = vsel %vm1127, %v1114, %v1128
    %vm1130 = vcmp.eq.s32.totalorder %v1125, 2
    %v1131 = vxor.u32 %v1114, 2147483648
    %v1132 = vsel %vm1130, %v1131, %v1122
    %v1133 = vsel %vm1126, %v1129, %v1132
    %v1134 = vsel %vm1123, nan, %v1133
    %v1135 = vand.u32 2147483647, %v203
    %vm1136 = vcmp.le.f32.partialorder %v1135, 0.7853982
    %vm1137 = vcmp.lt.s32.totalorder %v203, 0
    %v1138 = vand.u32 %v203, 2139095040
    %v1139 = vshrl.u32 %v1138, 23
    %v1140 = vsub.s32 %v1139, 127
    %v1141 = vand.u32 2147483647, %v203
    %v1142 = vand.u32 %v1141, 8388607
    %v1143 = vor.u32 %v1142, 8388608
    %v1144 = vsub.s32 0, %v1143
    %v1145 = vadd.s32 %v1140, 1
    %vm1146 = vcmp.gt.s32.totalorder %v1145, 0
    %v1147 = vsel %vm1146, %v1145, 0
    %v1148 = vshrl.u32 %v1147, 5
    %v1149 = vand.u32 %v1147, 31
    %v1150 = vsub.s32 32, %v1149
    %v1151 = vshrl.u32 683565275, %v1150
    %v1152 = vshll.u32 683565275, %v1149
    %v1153 = vshrl.u32 2475754826, %v1150
    %v1154 = vor.u32 %v1152, %v1153
    %v1155 = vshll.u32 2475754826, %v1149
    %v1156 = vshrl.u32 2131351028, %v1150
    %v1157 = vor.u32 %v1155, %v1156
    %v1158 = vshll.u32 2131351028, %v1149
    %v1159 = vshrl.u32 2102212464, %v1150
    %v1160 = vor.u32 %v1158, %v1159
    %v1161 = vshll.u32 2102212464, %v1149
    %v1162 = vshrl.u32 920167782, %v1150
    %v1163 = vor.u32 %v1161, %v1162
    %v1164 = vshll.u32 920167782, %v1149
    %v1165 = vshrl.u32 1326507024, %v1150
    %v1166 = vor.u32 %v1164, %v1165
    %vm1167 = vcmp.lt.s32.totalorder %v1148, 1
    %vm1168 = vcmp.lt.s32.totalorder %v1148, 2
    %vm1169 = vcmp.lt.s32.totalorder %v1148, 3
    %vm1170 = vcmp.lt.s32.totalorder %v1148, 4
    %v1171 = vsel %vm1167, %v1151, %v1154
    %v1172 = vsel %vm1170, %v1160, 2102212464
    %v1173 = vsel %vm1169, %v1157, %v1172
    %v1174 = vsel %vm1168, %v1171, %v1173
    %v1175 = vsel %vm1167, %v1154, %v1157
    %v1176 = vsel %vm1170, %v1163, 920167782
    %v1177 = vsel %vm1169, %v1160, %v1176
    %v1178 = vsel %vm1168, %v1175, %v1177
    %v1179 = vsel %vm1167, %v1157, %v1160
    %v1180 = vsel %vm1170, %v1166, 1326507024
    %v1181 = vsel %vm1169, %v1163, %v1180
    %v1182 = vsel %vm1168, %v1179, %v1181
    %v1183 = vshll.u32 %v1143, 8
    %v1184 = vand.u32 %v1183, 65535
    %v1185 = vshrl.u32 %v1183, 16
    %v1186 = vand.u32 %v1182, 65535
    %v1187 = vshrl.u32 %v1182, 16
    %v1188 = vmul.u32 %v1184, %v1186
    %v1189 = vmul.u32 %v1184, %v1187
    %v1190 = vmul.u32 %v1185, %v1186
    %v1191 = vmul.u32 %v1185, %v1187
    %v1192 = vshll.u32 %v1189, 16
    %v1193 = vshrl.u32 %v1189, 16
    %v1194 = vshll.u32 %v1190, 16
    %v1195 = vshrl.u32 %v1190, 16
    %vm1196 = vc.u32 %v1188, %v1192
    %v1197 = vsel %vm1196, 1, 0
    %v1198 = vadd.s32 %v1188, %v1192
    %v1199 = vadd.s32 %v1191, %v1197
    %vm1200 = vc.u32 %v1198, %v1194
    %v1201 = vsel %vm1200, 1, 0
    %v1202 = vadd.s32 %v1198, %v1194
    %v1203 = vadd.s32 %v1199, %v1201
    %v1204 = vadd.s32 %v1203, %v1193
    %v1205 = vadd.s32 %v1204, %v1195
    %v1206 = vand.u32 %v1183, 65535
    %v1207 = vshrl.u32 %v1183, 16
    %v1208 = vand.u32 %v1178, 65535
    %v1209 = vshrl.u32 %v1178, 16
    %v1210 = vmul.u32 %v1206, %v1208
    %v1211 = vmul.u32 %v1206, %v1209
    %v1212 = vmul.u32 %v1207, %v1208
    %v1213 = vmul.u32 %v1207, %v1209
    %v1214 = vshll.u32 %v1211, 16
    %v1215 = vshrl.u32 %v1211, 16
    %v1216 = vshll.u32 %v1212, 16
    %v1217 = vshrl.u32 %v1212, 16
    %vm1218 = vc.u32 %v1210, %v1214
    %v1219 = vsel %vm1218, 1, 0
    %v1220 = vadd.s32 %v1210, %v1214
    %v1221 = vadd.s32 %v1213, %v1219
    %vm1222 = vc.u32 %v1220, %v1216
    %v1223 = vsel %vm1222, 1, 0
    %v1224 = vadd.s32 %v1220, %v1216
    %v1225 = vadd.s32 %v1221, %v1223
    %v1226 = vadd.s32 %v1225, %v1215
    %v1227 = vadd.s32 %v1226, %v1217
    %v1228 = vmul.u32 %v1183, %v1174
    %v1229 = vadd.s32 %v1205, %v1224
    %vm1230 = vc.u32 %v1205, %v1224
    %v1231 = vadd.s32 %v1227, 1
    %v1232 = vsel %vm1230, %v1231, %v1227
    %v1233 = vadd.s32 %v1228, %v1232
    %v1234 = vadd.s32 %v1233, 536870912
    %v1235 = vshrl.u32 %v1234, 30
    %v1236 = vshll.u32 %v1235, 30
    %v1237 = vsub.s32 %v1233, %v1236
    %vm1238 = vcmp.lt.s32.totalorder %v1237, 0
    %v1239 = vsub.s32 0, %v1237
    %v1240 = vsel %vm1238, %v1239, %v1237
    %v1241 = vclz %v1240
    %v1242 = vsub.s32 %v1241, 2
    %vm1243 = vcmp.gt.s32.totalorder 0, %v1242
    %v1244 = vsel %vm1243, 0, %v1242
    %v1245 = vsub.s32 32, %v1244
    %v1246 = vshll.u32 %v1237, %v1244
    %v1247 = vshrl.u32 %v1229, %v1245
    %v1248 = vor.u32 %v1246, %v1247
    %v1249 = vsub.s32 4294967266, %v1244
    %v1250 = vadd.s32 %v1249, 127
    %v1251 = vshll.u32 %v1250, 23
    %v1252 = vor.u32 4788187, %v1251
    %v1253 = vand.u32 2147483647, %v1252
    %v1255 = vcvt.s32.f32 %v1248
    %v1256 = vmul.f32 %v1255, %v1253
    %v1257 = vxor.u32 %v1256, 2147483648
    %v1258 = vsel %vm1137, %v1257, %v1256
    %v1259 = vsub.s32 4, %v1235
    %v1260 = vsel %vm1137, %v1259, %v1235
    %v1261 = vsel %vm1136, %v203, %v1258
    %v1262 = vsel %vm1136, 0, %v1260
    %v1263 = vmul.f32 %v1261, %v1261
    %v1264 = vmul.f32 %v1263, -0.001358992
    %v1265 = vadd.f32 %v1264, 0.041655596
    %v1266 = vmul.f32 %v1263, %v1265
    %v1267 = vadd.f32 %v1266, -0.4999988
    %v1268 = vmul.f32 %v1263, %v1267
    %v1269 = vadd.f32 1.0, %v1268
    %v1270 = vmul.f32 %v1261, %v1261
    %v1271 = vmul.f32 %v1270, -0.00019511016
    %v1272 = vadd.f32 %v1271, 0.008332121
    %v1273 = vmul.f32 %v1270, %v1272
    %v1274 = vadd.f32 %v1273, -0.16666654
    %v1275 = vmul.f32 %v1270, %v1274
    %v1276 = vadd.f32 %v1275, 1.0
    %v1277 = vmul.f32 %v1276, %v1261
    %vm1278 = vweird.f32 %v203
    %v1279 = vadd.s32 %v1262, 3
    %v1280 = vand.u32 %v1279, 3
    %vm1281 = vcmp.lt.s32.totalorder %v1280, 2
    %vm1282 = vcmp.eq.s32.totalorder %v1280, 0
    %v1283 = vxor.u32 %v1277, 2147483648
    %v1284 = vsel %vm1282, %v1269, %v1283
    %vm1285 = vcmp.eq.s32.totalorder %v1280, 2
    %v1286 = vxor.u32 %v1269, 2147483648
    %v1287 = vsel %vm1285, %v1286, %v1277
    %v1288 = vsel %vm1281, %v1284, %v1287
    %v1289 = vsel %vm1278, nan, %v1288
    %v1290 = vand.u32 2147483647, %v204
    %vm1291 = vcmp.le.f32.partialorder %v1290, 0.7853982
    %vm1292 = vcmp.lt.s32.totalorder %v204, 0
    %v1293 = vand.u32 %v204, 2139095040
    %v1294 = vshrl.u32 %v1293, 23
    %v1295 = vsub.s32 %v1294, 127
    %v1296 = vand.u32 2147483647, %v204
    %v1297 = vand.u32 %v1296, 8388607
    %v1298 = vor.u32 %v1297, 8388608
    %v1299 = vsub.s32 0, %v1298
    %v1300 = vadd.s32 %v1295, 1
    %vm1301 = vcmp.gt.s32.totalorder %v1300, 0
    %v1302 = vsel %vm1301, %v1300, 0
    %v1303 = vshrl.u32 %v1302, 5
    %v1304 = vand.u32 %v1302, 31
    %v1305 = vsub.s32 32, %v1304
    %v1306 = vshrl.u32 683565275, %v1305
    %v1307 = vshll.u32 683565275, %v1304
    %v1308 = vshrl.u32 2475754826, %v1305
    %v1309 = vor.u32 %v1307, %v1308
    %v1310 = vshll.u32 2475754826, %v1304
    %v1311 = vshrl.u32 2131351028, %v1305
    %v1312 = vor.u32 %v1310, %v1311
    %v1313 = vshll.u32 2131351028, %v1304
    %v1314 = vshrl.u32 2102212464, %v1305
    %v1315 = vor.u32 %v1313, %v1314
    %v1316 = vshll.u32 2102212464, %v1304
    %v1317 = vshrl.u32 920167782, %v1305
    %v1318 = vor.u32 %v1316, %v1317
    %v1319 = vshll.u32 920167782, %v1304
    %v1320 = vshrl.u32 1326507024, %v1305
    %v1321 = vor.u32 %v1319, %v1320
    %vm1322 = vcmp.lt.s32.totalorder %v1303, 1
    %vm1323 = vcmp.lt.s32.totalorder %v1303, 2
    %vm1324 = vcmp.lt.s32.totalorder %v1303, 3
    %vm1325 = vcmp.lt.s32.totalorder %v1303, 4
    %v1326 = vsel %vm1322, %v1306, %v1309
    %v1327 = vsel %vm1325, %v1315, 2102212464
    %v1328 = vsel %vm1324, %v1312, %v1327
    %v1329 = vsel %vm1323, %v1326, %v1328
    %v1330 = vsel %vm1322, %v1309, %v1312
    %v1331 = vsel %vm1325, %v1318, 920167782
    %v1332 = vsel %vm1324, %v1315, %v1331
    %v1333 = vsel %vm1323, %v1330, %v1332
    %v1334 = vsel %vm1322, %v1312, %v1315
    %v1335 = vsel %vm1325, %v1321, 1326507024
    %v1336 = vsel %vm1324, %v1318, %v1335
    %v1337 = vsel %vm1323, %v1334, %v1336
    %v1338 = vshll.u32 %v1298, 8
    %v1339 = vand.u32 %v1338, 65535
    %v1340 = vshrl.u32 %v1338, 16
    %v1341 = vand.u32 %v1337, 65535
    %v1342 = vshrl.u32 %v1337, 16
    %v1343 = vmul.u32 %v1339, %v1341
    %v1344 = vmul.u32 %v1339, %v1342
    %v1345 = vmul.u32 %v1340, %v1341
    %v1346 = vmul.u32 %v1340, %v1342
    %v1347 = vshll.u32 %v1344, 16
    %v1348 = vshrl.u32 %v1344, 16
    %v1349 = vshll.u32 %v1345, 16
    %v1350 = vshrl.u32 %v1345, 16
    %vm1351 = vc.u32 %v1343, %v1347
    %v1352 = vsel %vm1351, 1, 0
    %v1353 = vadd.s32 %v1343, %v1347
    %v1354 = vadd.s32 %v1346, %v1352
    %vm1355 = vc.u32 %v1353, %v1349
    %v1356 = vsel %vm1355, 1, 0
    %v1357 = vadd.s32 %v1353, %v1349
    %v1358 = vadd.s32 %v1354, %v1356
    %v1359 = vadd.s32 %v1358, %v1348
    %v1360 = vadd.s32 %v1359, %v1350
    %v1361 = vand.u32 %v1338, 65535
    %v1362 = vshrl.u32 %v1338, 16
    %v1363 = vand.u32 %v1333, 65535
    %v1364 = vshrl.u32 %v1333, 16
    %v1365 = vmul.u32 %v1361, %v1363
    %v1366 = vmul.u32 %v1361, %v1364
    %v1367 = vmul.u32 %v1362, %v1363
    %v1368 = vmul.u32 %v1362, %v1364
    %v1369 = vshll.u32 %v1366, 16
    %v1370 = vshrl.u32 %v1366, 16
    %v1371 = vshll.u32 %v1367, 16
    %v1372 = vshrl.u32 %v1367, 16
    %vm1373 = vc.u32 %v1365, %v1369
    %v1374 = vsel %vm1373, 1, 0
    %v1375 = vadd.s32 %v1365, %v1369
    %v1376 = vadd.s32 %v1368, %v1374
    %vm1377 = vc.u32 %v1375, %v1371
    %v1378 = vsel %vm1377, 1, 0
    %v1379 = vadd.s32 %v1375, %v1371
    %v1380 = vadd.s32 %v1376, %v1378
    %v1381 = vadd.s32 %v1380, %v1370
    %v1382 = vadd.s32 %v1381, %v1372
    %v1383 = vmul.u32 %v1338, %v1329
    %v1384 = vadd.s32 %v1360, %v1379
    %vm1385 = vc.u32 %v1360, %v1379
    %v1386 = vadd.s32 %v1382, 1
    %v1387 = vsel %vm1385, %v1386, %v1382
    %v1388 = vadd.s32 %v1383, %v1387
    %v1389 = vadd.s32 %v1388, 536870912
    %v1390 = vshrl.u32 %v1389, 30
    %v1391 = vshll.u32 %v1390, 30
    %v1392 = vsub.s32 %v1388, %v1391
    %vm1393 = vcmp.lt.s32.totalorder %v1392, 0
    %v1394 = vsub.s32 0, %v1392
    %v1395 = vsel %vm1393, %v1394, %v1392
    %v1396 = vclz %v1395
    %v1397 = vsub.s32 %v1396, 2
    %vm1398 = vcmp.gt.s32.totalorder 0, %v1397
    %v1399 = vsel %vm1398, 0, %v1397
    %v1400 = vsub.s32 32, %v1399
    %v1401 = vshll.u32 %v1392, %v1399
    %v1402 = vshrl.u32 %v1384, %v1400
    %v1403 = vor.u32 %v1401, %v1402
    %v1404 = vsub.s32 4294967266, %v1399
    %v1405 = vadd.s32 %v1404, 127
    %v1406 = vshll.u32 %v1405, 23
    %v1407 = vor.u32 4788187, %v1406
    %v1408 = vand.u32 2147483647, %v1407
    %v1410 = vcvt.s32.f32 %v1403
    %v1411 = vmul.f32 %v1410, %v1408
    %v1412 = vxor.u32 %v1411, 2147483648
    %v1413 = vsel %vm1292, %v1412, %v1411
    %v1414 = vsub.s32 4, %v1390
    %v1415 = vsel %vm1292, %v1414, %v1390
    %v1416 = vsel %vm1291, %v204, %v1413
    %v1417 = vsel %vm1291, 0, %v1415
    %v1418 = vmul.f32 %v1416, %v1416
    %v1419 = vmul.f32 %v1418, -0.001358992
    %v1420 = vadd.f32 %v1419, 0.041655596
    %v1421 = vmul.f32 %v1418, %v1420
    %v1422 = vadd.f32 %v1421, -0.4999988
    %v1423 = vmul.f32 %v1418, %v1422
    %v1424 = vadd.f32 1.0, %v1423
    %v1425 = vmul.f32 %v1416, %v1416
    %v1426 = vmul.f32 %v1425, -0.00019511016
    %v1427 = vadd.f32 %v1426, 0.008332121
    %v1428 = vmul.f32 %v1425, %v1427
    %v1429 = vadd.f32 %v1428, -0.16666654
    %v1430 = vmul.f32 %v1425, %v1429
    %v1431 = vadd.f32 %v1430, 1.0
    %v1432 = vmul.f32 %v1431, %v1416
    %vm1433 = vweird.f32 %v204
    %v1434 = vadd.s32 %v1417, 3
    %v1435 = vand.u32 %v1434, 3
    %vm1436 = vcmp.lt.s32.totalorder %v1435, 2
    %vm1437 = vcmp.eq.s32.totalorder %v1435, 0
    %v1438 = vxor.u32 %v1432, 2147483648
    %v1439 = vsel %vm1437, %v1424, %v1438
    %vm1440 = vcmp.eq.s32.totalorder %v1435, 2
    %v1441 = vxor.u32 %v1424, 2147483648
    %v1442 = vsel %vm1440, %v1441, %v1432
    %v1443 = vsel %vm1436, %v1439, %v1442
    %v1444 = vsel %vm1433, nan, %v1443
    %v1445 = vld [vmem:[%s4] sm:$0xff]
    %v1446 = vld [vmem:[%s4 + $0x8] sm:$0xff]
    %v1447 = vld [vmem:[%s4 + $0x10] sm:$0xff]
    %v1448 = vld [vmem:[%s4 + $0x18] sm:$0xff]
    %v1449 = vld [vmem:[%s4 + $0x20] sm:$0xff]
    %v1450 = vld [vmem:[%s4 + $0x28] sm:$0xff]
    %v1451 = vld [vmem:[%s4 + $0x30] sm:$0xff]
    %v1452 = vld [vmem:[%s4 + $0x38] sm:$0xff]
    %1454 = vset.pattern.permute.xlu0 0
    %1455 = vperm.xlu0 %1454, %v1445
    %v1456 = vpop.permute.xlu0 %1455
    %1459 = vset.pattern.permute.xlu0 0
    %1460 = vperm.xlu0 %1459, %v1446
    %v1461 = vpop.permute.xlu0 %1460
    %1464 = vset.pattern.permute.xlu0 0
    %1465 = vperm.xlu0 %1464, %v1447
    %v1466 = vpop.permute.xlu0 %1465
    %1469 = vset.pattern.permute.xlu0 0
    %1470 = vperm.xlu0 %1469, %v1448
    %v1471 = vpop.permute.xlu0 %1470
    %1474 = vset.pattern.permute.xlu0 0
    %1475 = vperm.xlu0 %1474, %v1449
    %v1476 = vpop.permute.xlu0 %1475
    %1479 = vset.pattern.permute.xlu0 0
    %1480 = vperm.xlu0 %1479, %v1450
    %v1481 = vpop.permute.xlu0 %1480
    %1484 = vset.pattern.permute.xlu0 0
    %1485 = vperm.xlu0 %1484, %v1451
    %v1486 = vpop.permute.xlu0 %1485
    %1489 = vset.pattern.permute.xlu0 0
    %1490 = vperm.xlu0 %1489, %v1452
    %v1491 = vpop.permute.xlu0 %1490
    %v1493 = vmul.f32 %v359, %v1456
    %v1494 = vmul.f32 %v514, %v1461
    %v1495 = vmul.f32 %v669, %v1466
    %v1496 = vmul.f32 %v824, %v1471
    %v1497 = vmul.f32 %v979, %v1476
    %v1498 = vmul.f32 %v1134, %v1481
    %v1499 = vmul.f32 %v1289, %v1486
    %v1500 = vmul.f32 %v1444, %v1491
    %v1501 = vadd.f32 %v1493, %v1494
    %v1502 = vadd.f32 %v1501, %v1495
    %v1503 = vadd.f32 %v1502, %v1496
    %v1504 = vadd.f32 %v1503, %v1497
    %v1505 = vadd.f32 %v1504, %v1498
    %v1506 = vadd.f32 %v1505, %v1499
    %v1507 = vadd.f32 %v1506, %v1500
    %v1508 = vrot.slane %v1507, 4
    %v1509 = vadd.f32 %v1507, %v1508
    %v1510 = vrot.slane %v1509, 2
    %v1511 = vadd.f32 %v1509, %v1510
    %v1512 = vrot.slane %v1511, 1
    %v1513 = vadd.f32 %v1511, %v1512
    %s1514 = sld [smem:[#allocation2]]
    %v1515 = vstv %s1514
    %v1516 = vadd.f32 %v1513, %v1515
    %1517 = vst [vmem:[#allocation3] sm:$0x1] %v1516
    // Predicated region
    $region26: #{tpu_custom_call.1} parent=1 // pred_check
      _
    $region27: #{tpu_custom_call.1} parent=1 // pred_check_branch
      %1519 = sbr.rel (0) target = $region29
    $region28: #{tpu_custom_call.1} parent=1 // pred_region
      %1521 = vsyncadd [#allocation4], 0
      %s1523 = sshll.u32 [#allocation3], 4
      %s1524 = int_to_ptr.vmem [resolvable:$true] %s1523
      %s1525 = sshll.u32 %s6, 4
      %s1526 = int_to_ptr.hbm [resolvable:$true] %s1525
      %1528 = dma.vmem_to_hbm [thread:$0]  %s1524, 16, %s1526, [#allocation4]
    $region29: #{tpu_custom_call.1} parent=1 // pred_fallthru
      _
    // Predicated region
    $region30: #{tpu_custom_call.1} parent=1 // pred_check
      _
    $region31: #{tpu_custom_call.1} parent=1 // pred_check_branch
      %1530 = sbr.rel (0) target = $region33
    $region32: #{tpu_custom_call.1} parent=1 // pred_region
      %1532 = dma.done [#allocation4], 16
    $region33: #{tpu_custom_call.1} parent=1 // pred_fallthru
      _
    %1533 = vsyncpa [#allocation4], 1

</llo_original>
